<compile_context>
chip_gen: v7x
topology: tpu7x:2x2x1
jax: 0.10.0
libtpu: 0.0.40
codegen_flags: <defaults>
</compile_context>

<pallas_src>
import functools

import jax
import jax.numpy as jnp
from jax import lax
from jax.experimental import pallas as pl
from jax.experimental.pallas import tpu as pltpu


def _round_up(v, mult):
    return (v + mult - 1) // mult * mult


def _downblock_kernel(xin_ref, w1_ref, b1_ref, w2_ref, b2_ref, mask_ref,
                      out_ref, flat2, patches, *, wpad, margin):
    """One image per grid step: two fused (3x3 conv + folded eval-BN + ReLU).

    xin_ref : (1, Cin, Lin)   bf16 pooled image, zero pad-ring + zero margins,
                              spatially flattened; image data at [margin, margin+Lp).
    w1_ref  : (Cout, 9*Cin)   bf16 conv1 im2col weights, BN1 scale pre-folded.
    b1_ref  : (Cout, 1)       f32 folded conv1-bias + BN1 shift.
    w2_ref  : (Cout, 9*Cout)  bf16 conv2 weights (BN2 scale folded).
    b2_ref  : (Cout, 1)       f32 folded conv2-bias + BN2 shift.
    mask_ref: (1, Wm)         f32, 1.0 on interior pixels of the padded image.
    out_ref : (1, Cout, Wm)   conv2 output, padded-flat, lane-dense (Wm % 128 == 0).
    flat2   : (Cout, Lin)     bf16 scratch: conv1 output staged as conv2 input.
    patches : (9*Cmax, Wm)    bf16 scratch: im2col buffer shared by both convs.
    """
    cin = xin_ref.shape[1]
    cout = w2_ref.shape[0]
    wm = out_ref.shape[2]
    m = margin

    x = xin_ref.at[0]                      # (Cin, Lin) ref view, no copy
    mask = mask_ref[...]                   # (1, Wm)

    def im2col(src, ch):
        # In the padded-flat layout every 3x3 tap is a constant lane offset, so
        # the im2col matrix is built from 9 plain 2-D slice copies (no reshapes).
        # TODO(synk): build the dx=+-1 taps with pltpu.roll on the dy slab to cut
        #             misaligned vld traffic (wrap element only feeds masked ring
        #             outputs), moving 2/3 of this work to the XLU slot.
        for dy in range(3):
            for dx in range(3):
                t = (dy - 1) * wpad + (dx - 1)
                k = dy * 3 + dx
                patches[k * ch:(k + 1) * ch, :] = src[:, m + t:m + t + wm]
        return patches[0:9 * ch, :]

    # ---- ConvBlock 1: one (Cout, 9Cin) @ (9Cin, Wm) bf16 MXU matmul, f32 acc.
    h1 = jnp.dot(w1_ref[...], im2col(x, cin), preferred_element_type=jnp.float32)
    y1 = jnp.maximum(h1 + b1_ref[...], 0.0) * mask     # BN scale already in w1

    # Stage conv1 output as conv2's padded-flat input; margins zeroed (the pad
    # ring itself was zeroed by the mask above, as conv2's padding=1 requires).
    flat2[:, 0:m] = jnp.zeros((cout, m), flat2.dtype)
    flat2[:, m + wm:] = jnp.zeros((cout, flat2.shape[1] - m - wm), flat2.dtype)
    flat2[:, m:m + wm] = y1.astype(flat2.dtype)

    # ---- ConvBlock 2
    h2 = jnp.dot(w2_ref[...], im2col(flat2, cout),
                 preferred_element_type=jnp.float32)
    y2 = jnp.maximum(h2 + b2_ref[...], 0.0)

    out_ref[0] = y2.astype(out_ref.dtype)              # one lane-dense slab


def down_block_forward(x, params, *, eps=1e-5):
    """x: (N, Cin, H, W) float32 NCHW.  Returns (N, Cout, H//2, W//2) float32."""
    N, Cin, H, W = x.shape
    Cout = params["conv1_w"].shape[0]
    assert H % 2 == 0 and W % 2 == 0, "MaxPool2d(2) expects even spatial dims"
    H2, W2 = H // 2, W // 2
    wpad = W2 + 2
    Lp = (H2 + 2) * wpad                    # per-image padded-flat extent
    m = _round_up(wpad + 1, 128)            # left margin >= max |tap|, lane-aligned
    Wm = _round_up(Lp, 128)                 # matmul / output lane width (lane-dense)
    Lin = _round_up(m + Wm + (wpad + 1), 128)   # per-image buffer width incl. margins

    # Fold conv bias + eval-mode BN into per-channel scale/shift, then fold the
    # scale into the conv weights so the kernel epilogue is bias-add + ReLU.
    s1 = params["bn1_g"] / jnp.sqrt(params["bn1_v"] + eps)
    b1 = params["bn1_b"] + s1 * (params["conv1_b"] - params["bn1_m"])
    s2 = params["bn2_g"] / jnp.sqrt(params["bn2_v"] + eps)
    b2 = params["bn2_b"] + s2 * (params["conv2_b"] - params["bn2_m"])

    # (O, I, 3, 3) -> (O, kh, kw, I) -> (O, 9*I), tap-major; bf16 for the MXU.
    w1m = jnp.transpose(params["conv1_w"], (0, 2, 3, 1)).reshape(Cout, 9 * Cin)
    w2m = jnp.transpose(params["conv2_w"], (0, 2, 3, 1)).reshape(Cout, 9 * Cout)
    w1m = (s1[:, None] * w1m).astype(jnp.bfloat16)
    w2m = (s2[:, None] * w2m).astype(jnp.bfloat16)
    b1 = b1.reshape(Cout, 1).astype(jnp.float32)
    b2 = b2.reshape(Cout, 1).astype(jnp.float32)

    # MaxPool2d(2): one fused XLA reduce (shrinks the kernel's HBM input 4x),
    # then pad-ring + margins + flatten + bf16 cast in one layout pass.  The
    # kernel receives its final layout directly: no in-kernel repacking.
    pooled = x.reshape(N, Cin, H2, 2, W2, 2).max(axis=(3, 5))
    xin = jnp.pad(pooled, ((0, 0), (0, 0), (1, 1), (1, 1))).reshape(N, Cin, Lp)
    xin = jnp.pad(xin, ((0, 0), (0, 0), (m, Lin - Lp - m))).astype(jnp.bfloat16)

    # Interior mask for one padded-flat image (1 inside, 0 on the pad ring and
    # the [Lp, Wm) alignment tail); broadcast across channels in-kernel.
    ii = jnp.arange(Wm)
    rr = ii // wpad
    cc = ii % wpad
    interior = (ii < Lp) & (rr >= 1) & (rr <= H2) & (cc >= 1) & (cc <= W2)
    mask = interior.astype(jnp.float32).reshape(1, Wm)

    Cmax = max(Cin, Cout)
    kernel = functools.partial(_downblock_kernel, wpad=wpad, margin=m)

    out = pl.pallas_call(
        kernel,
        out_shape=jax.ShapeDtypeStruct((N, Cout, Wm), x.dtype),
        grid=(N,),   # one image per step: pipelined DMA + megacore sharding
        in_specs=[
            pl.BlockSpec((1, Cin, Lin), lambda n: (n, 0, 0)),
            pl.BlockSpec((Cout, 9 * Cin), lambda n: (0, 0)),
            pl.BlockSpec((Cout, 1), lambda n: (0, 0)),
            pl.BlockSpec((Cout, 9 * Cout), lambda n: (0, 0)),
            pl.BlockSpec((Cout, 1), lambda n: (0, 0)),
            pl.BlockSpec((1, Wm), lambda n: (0, 0)),
        ],
        out_specs=pl.BlockSpec((1, Cout, Wm), lambda n: (n, 0, 0)),
        scratch_shapes=[
            pltpu.VMEM((Cout, Lin), jnp.bfloat16),      # conv2 padded-flat input
            pltpu.VMEM((9 * Cmax, Wm), jnp.bfloat16),   # im2col, shared by both convs
        ],
        compiler_params=pltpu.CompilerParams(
            dimension_semantics=("parallel",),
            vmem_limit_bytes=48 * 1024 * 1024),
    )(xin, w1m, b1, w2m, b2, mask)

    # Strip the pad ring / alignment tail: free reshape + tiny slice, NCHW out.
    out = out[:, :, :Lp].reshape(N, Cout, H2 + 2, W2 + 2)[:, :, 1:H2 + 1, 1:W2 + 1]
    return out


def _reference_forward(x, params, *, eps=1e-5):
    """Pure-JAX (lax) NCHW f32 reference matching the PyTorch module (eval BN)."""
    N, C, H, W = x.shape
    z = x.reshape(N, C, H // 2, 2, W // 2, 2).max(axis=(3, 5))   # MaxPool2d(2)

    def conv3x3(z, w, b):
        y = lax.conv_general_dilated(
            z, w, window_strides=(1, 1), padding=((1, 1), (1, 1)),
            dimension_numbers=("NCHW", "OIHW", "NCHW"))
        return y + b[None, :, None, None]

    def bn(z, g, beta, mmean, v):
        s = g / jnp.sqrt(v + eps)
        return z * s[None, :, None, None] + (beta - mmean * s)[None, :, None, None]

    z = jax.nn.relu(bn(conv3x3(z, params["conv1_w"], params["conv1_b"]),
                       params["bn1_g"], params["bn1_b"],
                       params["bn1_m"], params["bn1_v"]))
    z = jax.nn.relu(bn(conv3x3(z, params["conv2_w"], params["conv2_b"]),
                       params["bn2_g"], params["bn2_b"],
                       params["bn2_m"], params["bn2_v"]))
    return z


def _init_params(key, in_channels, out_channels):
    Ci, Co = in_channels, out_channels
    ks = jax.random.split(key, 12)
    return {
        "conv1_w": 0.2 * jax.random.normal(ks[0], (Co, Ci, 3, 3), jnp.float32),
        "conv1_b": 0.1 * jax.random.normal(ks[1], (Co,), jnp.float32),
        "bn1_g": 1.0 + 0.1 * jax.random.normal(ks[2], (Co,), jnp.float32),
        "bn1_b": 0.1 * jax.random.normal(ks[3], (Co,), jnp.float32),
        "bn1_m": 0.05 * jax.random.normal(ks[4], (Co,), jnp.float32),
        "bn1_v": 1.0 + 0.1 * jnp.abs(jax.random.normal(ks[5], (Co,), jnp.float32)),
        "conv2_w": 0.2 * jax.random.normal(ks[6], (Co, Co, 3, 3), jnp.float32),
        "conv2_b": 0.1 * jax.random.normal(ks[7], (Co,), jnp.float32),
        "bn2_g": 1.0 + 0.1 * jax.random.normal(ks[8], (Co,), jnp.float32),
        "bn2_b": 0.1 * jax.random.normal(ks[9], (Co,), jnp.float32),
        "bn2_m": 0.05 * jax.random.normal(ks[10], (Co,), jnp.float32),
        "bn2_v": 1.0 + 0.1 * jnp.abs(jax.random.normal(ks[11], (Co,), jnp.float32)),
    }


if __name__ == "__main__":
    N, Cin, Cout, H, W = 2, 4, 8, 16, 16   # _DownBlock(in_channels=4, out_channels=8)
    key = jax.random.PRNGKey(0)
    kx, kp = jax.random.split(key)
    x = jax.random.normal(kx, (N, Cin, H, W), jnp.float32)
    params = _init_params(kp, Cin, Cout)

    out = jax.block_until_ready(jax.jit(down_block_forward)(x, params))
    assert out.shape == (N, Cout, H // 2, W // 2), out.shape

    ref = jax.block_until_ready(_reference_forward(x, params))
    err = float(jnp.max(jnp.abs(out - ref)))
    scale = float(jnp.max(jnp.abs(ref)))
    # bf16 matmul inputs (f32 accumulation): compare with a relative tolerance.
    assert err <= 5e-2 * scale + 1e-3, f"rel err {err / scale:.4f} (abs {err:.4f})"

    print("KERNEL_OK")
</pallas_src>

<mosaic_0001>
module attributes {stable_mosaic.version = 11 : i64} {
  func.func @_downblock_kernel(%arg0: i32, %arg1: memref<1x4x384xbf16, #tpu.memory_space<vmem>>, %arg2: memref<8x36xbf16, #tpu.memory_space<vmem>>, %arg3: memref<8x1xf32, #tpu.memory_space<vmem>>, %arg4: memref<8x72xbf16, #tpu.memory_space<vmem>>, %arg5: memref<8x1xf32, #tpu.memory_space<vmem>>, %arg6: memref<1x128xf32, #tpu.memory_space<vmem>>, %arg7: memref<1x8x128xf32, #tpu.memory_space<vmem>>, %arg8: memref<8x384xbf16, #tpu.memory_space<vmem>>, %arg9: memref<72x128xbf16, #tpu.memory_space<vmem>>) attributes {dimension_semantics = [#tpu.dimension_semantics<parallel>], iteration_bounds = array<i64: 2>, scalar_prefetch = 0 : i64, scratch_operands = 2 : i64, tpu.core_type = #tpu.core_type<tc>, window_params = [{transform_indices = @transform_0, window_bounds = array<i64: 1, 4, 384>}, {pipeline_mode = #tpu.pipeline_mode<synchronous>, transform_indices = @transform_1, window_bounds = array<i64: 8, 36>}, {pipeline_mode = #tpu.pipeline_mode<synchronous>, transform_indices = @transform_2, window_bounds = array<i64: 8, 1>}, {pipeline_mode = #tpu.pipeline_mode<synchronous>, transform_indices = @transform_3, window_bounds = array<i64: 8, 72>}, {pipeline_mode = #tpu.pipeline_mode<synchronous>, transform_indices = @transform_4, window_bounds = array<i64: 8, 1>}, {pipeline_mode = #tpu.pipeline_mode<synchronous>, transform_indices = @transform_5, window_bounds = array<i64: 1, 128>}, {transform_indices = @transform_6, window_bounds = array<i64: 1, 8, 128>}]} {
    %c0 = arith.constant 0 : index
    %c0_0 = arith.constant 0 : index
    %0 = vector.load %arg6[%c0, %c0_0] : memref<1x128xf32, #tpu.memory_space<vmem>>, vector<1x128xf32>
    %c0_1 = arith.constant 0 : index
    %c0_2 = arith.constant 0 : index
    %1 = vector.load %arg2[%c0_1, %c0_2] : memref<8x36xbf16, #tpu.memory_space<vmem>>, vector<8x36xbf16>
    %c0_i32 = arith.constant 0 : i32
    %c0_i32_3 = arith.constant 0 : i32
    %c0_i32_4 = arith.constant 0 : i32
    %2 = tpu.memref_slice %arg1[%c0_i32, %c0_i32_3, %c0_i32_4] : memref<1x4x384xbf16, #tpu.memory_space<vmem>> -> memref<1x4x384xbf16, #tpu.memory_space<vmem>>
    %3 = tpu.memref_squeeze %2 : memref<1x4x384xbf16, #tpu.memory_space<vmem>> -> memref<4x384xbf16, #tpu.memory_space<vmem>>
    %c0_5 = arith.constant 0 : index
    %c117 = arith.constant 117 : index
    %4 = vector.load %3[%c0_5, %c117] : memref<4x384xbf16, #tpu.memory_space<vmem>>, vector<4x128xbf16>
    %c0_6 = arith.constant 0 : index
    %c0_7 = arith.constant 0 : index
    %5 = vector.load %arg9[%c0_6, %c0_7] : memref<72x128xbf16, #tpu.memory_space<vmem>>, vector<4x128xbf16>
    tpu.vector_store %arg9[%c0_6, %c0_7], %4 {strides = array<i32>} : memref<72x128xbf16, #tpu.memory_space<vmem>>, vector<4x128xbf16>,
    %c0_i32_8 = arith.constant 0 : i32
    %c0_i32_9 = arith.constant 0 : i32
    %c0_i32_10 = arith.constant 0 : i32
    %6 = tpu.memref_slice %arg1[%c0_i32_8, %c0_i32_9, %c0_i32_10] : memref<1x4x384xbf16, #tpu.memory_space<vmem>> -> memref<1x4x384xbf16, #tpu.memory_space<vmem>>
    %7 = tpu.memref_squeeze %6 : memref<1x4x384xbf16, #tpu.memory_space<vmem>> -> memref<4x384xbf16, #tpu.memory_space<vmem>>
    %c0_11 = arith.constant 0 : index
    %c118 = arith.constant 118 : index
    %8 = vector.load %7[%c0_11, %c118] : memref<4x384xbf16, #tpu.memory_space<vmem>>, vector<4x128xbf16>
    %c4 = arith.constant 4 : index
    %c0_12 = arith.constant 0 : index
    %9 = vector.load %arg9[%c4, %c0_12] : memref<72x128xbf16, #tpu.memory_space<vmem>>, vector<4x128xbf16>
    tpu.vector_store %arg9[%c4, %c0_12], %8 {strides = array<i32>} : memref<72x128xbf16, #tpu.memory_space<vmem>>, vector<4x128xbf16>,
    %c0_i32_13 = arith.constant 0 : i32
    %c0_i32_14 = arith.constant 0 : i32
    %c0_i32_15 = arith.constant 0 : i32
    %10 = tpu.memref_slice %arg1[%c0_i32_13, %c0_i32_14, %c0_i32_15] : memref<1x4x384xbf16, #tpu.memory_space<vmem>> -> memref<1x4x384xbf16, #tpu.memory_space<vmem>>
    %11 = tpu.memref_squeeze %10 : memref<1x4x384xbf16, #tpu.memory_space<vmem>> -> memref<4x384xbf16, #tpu.memory_space<vmem>>
    %c0_16 = arith.constant 0 : index
    %c119 = arith.constant 119 : index
    %12 = vector.load %11[%c0_16, %c119] : memref<4x384xbf16, #tpu.memory_space<vmem>>, vector<4x128xbf16>
    %c8 = arith.constant 8 : index
    %c0_17 = arith.constant 0 : index
    %13 = vector.load %arg9[%c8, %c0_17] : memref<72x128xbf16, #tpu.memory_space<vmem>>, vector<4x128xbf16>
    tpu.vector_store %arg9[%c8, %c0_17], %12 {strides = array<i32>} : memref<72x128xbf16, #tpu.memory_space<vmem>>, vector<4x128xbf16>,
    %c0_i32_18 = arith.constant 0 : i32
    %c0_i32_19 = arith.constant 0 : i32
    %c0_i32_20 = arith.constant 0 : i32
    %14 = tpu.memref_slice %arg1[%c0_i32_18, %c0_i32_19, %c0_i32_20] : memref<1x4x384xbf16, #tpu.memory_space<vmem>> -> memref<1x4x384xbf16, #tpu.memory_space<vmem>>
    %15 = tpu.memref_squeeze %14 : memref<1x4x384xbf16, #tpu.memory_space<vmem>> -> memref<4x384xbf16, #tpu.memory_space<vmem>>
    %c0_21 = arith.constant 0 : index
    %c127 = arith.constant 127 : index
    %16 = vector.load %15[%c0_21, %c127] : memref<4x384xbf16, #tpu.memory_space<vmem>>, vector<4x128xbf16>
    %c12 = arith.constant 12 : index
    %c0_22 = arith.constant 0 : index
    %17 = vector.load %arg9[%c12, %c0_22] : memref<72x128xbf16, #tpu.memory_space<vmem>>, vector<4x128xbf16>
    tpu.vector_store %arg9[%c12, %c0_22], %16 {strides = array<i32>} : memref<72x128xbf16, #tpu.memory_space<vmem>>, vector<4x128xbf16>,
    %c0_i32_23 = arith.constant 0 : i32
    %c0_i32_24 = arith.constant 0 : i32
    %c0_i32_25 = arith.constant 0 : i32
    %18 = tpu.memref_slice %arg1[%c0_i32_23, %c0_i32_24, %c0_i32_25] : memref<1x4x384xbf16, #tpu.memory_space<vmem>> -> memref<1x4x384xbf16, #tpu.memory_space<vmem>>
    %19 = tpu.memref_squeeze %18 : memref<1x4x384xbf16, #tpu.memory_space<vmem>> -> memref<4x384xbf16, #tpu.memory_space<vmem>>
    %c0_26 = arith.constant 0 : index
    %c128 = arith.constant 128 : index
    %20 = vector.load %19[%c0_26, %c128] : memref<4x384xbf16, #tpu.memory_space<vmem>>, vector<4x128xbf16>
    %c16 = arith.constant 16 : index
    %c0_27 = arith.constant 0 : index
    %21 = vector.load %arg9[%c16, %c0_27] : memref<72x128xbf16, #tpu.memory_space<vmem>>, vector<4x128xbf16>
    tpu.vector_store %arg9[%c16, %c0_27], %20 {strides = array<i32>} : memref<72x128xbf16, #tpu.memory_space<vmem>>, vector<4x128xbf16>,
    %c0_i32_28 = arith.constant 0 : i32
    %c0_i32_29 = arith.constant 0 : i32
    %c0_i32_30 = arith.constant 0 : i32
    %22 = tpu.memref_slice %arg1[%c0_i32_28, %c0_i32_29, %c0_i32_30] : memref<1x4x384xbf16, #tpu.memory_space<vmem>> -> memref<1x4x384xbf16, #tpu.memory_space<vmem>>
    %23 = tpu.memref_squeeze %22 : memref<1x4x384xbf16, #tpu.memory_space<vmem>> -> memref<4x384xbf16, #tpu.memory_space<vmem>>
    %c0_31 = arith.constant 0 : index
    %c129 = arith.constant 129 : index
    %24 = vector.load %23[%c0_31, %c129] : memref<4x384xbf16, #tpu.memory_space<vmem>>, vector<4x128xbf16>
    %c20 = arith.constant 20 : index
    %c0_32 = arith.constant 0 : index
    %25 = vector.load %arg9[%c20, %c0_32] : memref<72x128xbf16, #tpu.memory_space<vmem>>, vector<4x128xbf16>
    tpu.vector_store %arg9[%c20, %c0_32], %24 {strides = array<i32>} : memref<72x128xbf16, #tpu.memory_space<vmem>>, vector<4x128xbf16>,
    %c0_i32_33 = arith.constant 0 : i32
    %c0_i32_34 = arith.constant 0 : i32
    %c0_i32_35 = arith.constant 0 : i32
    %26 = tpu.memref_slice %arg1[%c0_i32_33, %c0_i32_34, %c0_i32_35] : memref<1x4x384xbf16, #tpu.memory_space<vmem>> -> memref<1x4x384xbf16, #tpu.memory_space<vmem>>
    %27 = tpu.memref_squeeze %26 : memref<1x4x384xbf16, #tpu.memory_space<vmem>> -> memref<4x384xbf16, #tpu.memory_space<vmem>>
    %c0_36 = arith.constant 0 : index
    %c137 = arith.constant 137 : index
    %28 = vector.load %27[%c0_36, %c137] : memref<4x384xbf16, #tpu.memory_space<vmem>>, vector<4x128xbf16>
    %c24 = arith.constant 24 : index
    %c0_37 = arith.constant 0 : index
    %29 = vector.load %arg9[%c24, %c0_37] : memref<72x128xbf16, #tpu.memory_space<vmem>>, vector<4x128xbf16>
    tpu.vector_store %arg9[%c24, %c0_37], %28 {strides = array<i32>} : memref<72x128xbf16, #tpu.memory_space<vmem>>, vector<4x128xbf16>,
    %c0_i32_38 = arith.constant 0 : i32
    %c0_i32_39 = arith.constant 0 : i32
    %c0_i32_40 = arith.constant 0 : i32
    %30 = tpu.memref_slice %arg1[%c0_i32_38, %c0_i32_39, %c0_i32_40] : memref<1x4x384xbf16, #tpu.memory_space<vmem>> -> memref<1x4x384xbf16, #tpu.memory_space<vmem>>
    %31 = tpu.memref_squeeze %30 : memref<1x4x384xbf16, #tpu.memory_space<vmem>> -> memref<4x384xbf16, #tpu.memory_space<vmem>>
    %c0_41 = arith.constant 0 : index
    %c138 = arith.constant 138 : index
    %32 = vector.load %31[%c0_41, %c138] : memref<4x384xbf16, #tpu.memory_space<vmem>>, vector<4x128xbf16>
    %c28 = arith.constant 28 : index
    %c0_42 = arith.constant 0 : index
    %33 = vector.load %arg9[%c28, %c0_42] : memref<72x128xbf16, #tpu.memory_space<vmem>>, vector<4x128xbf16>
    tpu.vector_store %arg9[%c28, %c0_42], %32 {strides = array<i32>} : memref<72x128xbf16, #tpu.memory_space<vmem>>, vector<4x128xbf16>,
    %c0_i32_43 = arith.constant 0 : i32
    %c0_i32_44 = arith.constant 0 : i32
    %c0_i32_45 = arith.constant 0 : i32
    %34 = tpu.memref_slice %arg1[%c0_i32_43, %c0_i32_44, %c0_i32_45] : memref<1x4x384xbf16, #tpu.memory_space<vmem>> -> memref<1x4x384xbf16, #tpu.memory_space<vmem>>
    %35 = tpu.memref_squeeze %34 : memref<1x4x384xbf16, #tpu.memory_space<vmem>> -> memref<4x384xbf16, #tpu.memory_space<vmem>>
    %c0_46 = arith.constant 0 : index
    %c139 = arith.constant 139 : index
    %36 = vector.load %35[%c0_46, %c139] : memref<4x384xbf16, #tpu.memory_space<vmem>>, vector<4x128xbf16>
    %c32 = arith.constant 32 : index
    %c0_47 = arith.constant 0 : index
    %37 = vector.load %arg9[%c32, %c0_47] : memref<72x128xbf16, #tpu.memory_space<vmem>>, vector<4x128xbf16>
    tpu.vector_store %arg9[%c32, %c0_47], %36 {strides = array<i32>} : memref<72x128xbf16, #tpu.memory_space<vmem>>, vector<4x128xbf16>,
    %c0_48 = arith.constant 0 : index
    %c0_49 = arith.constant 0 : index
    %38 = vector.load %arg9[%c0_48, %c0_49] : memref<72x128xbf16, #tpu.memory_space<vmem>>, vector<36x128xbf16>
    %cst = arith.constant dense<0.000000e+00> : vector<8x128xf32>
    %39 = tpu.matmul %1, %38, %cst {dimension_numbers = #tpu.dot_dimension_numbers<[1], [0], [0], [1], [0, 0, 1, 1], [], []>} : vector<8x36xbf16>, vector<36x128xbf16>, vector<8x128xf32> -> vector<8x128xf32>
    %c0_50 = arith.constant 0 : index
    %c0_51 = arith.constant 0 : index
    %40 = vector.load %arg3[%c0_50, %c0_51] : memref<8x1xf32, #tpu.memory_space<vmem>>, vector<8x1xf32>
    %41 = vector.broadcast %40 : vector<8x1xf32> to vector<8x128xf32>
    %42 = arith.addf %39, %41 : vector<8x128xf32>
    %cst_52 = arith.constant 0.000000e+00 : f32
    %43 = vector.broadcast %cst_52 : f32 to vector<8x128xf32>
    %44 = arith.maximumf %42, %43 : vector<8x128xf32>
    %45 = vector.broadcast %0 : vector<1x128xf32> to vector<8x128xf32>
    %46 = arith.mulf %44, %45 : vector<8x128xf32>
    %cst_53 = arith.constant 0.000000e+00 : bf16
    %47 = vector.broadcast %cst_53 : bf16 to vector<8x128xbf16>
    %c0_54 = arith.constant 0 : index
    %c0_55 = arith.constant 0 : index
    %48 = vector.load %arg8[%c0_54, %c0_55] : memref<8x384xbf16, #tpu.memory_space<vmem>>, vector<8x128xbf16>
    tpu.vector_store %arg8[%c0_54, %c0_55], %47 {strides = array<i32>} : memref<8x384xbf16, #tpu.memory_space<vmem>>, vector<8x128xbf16>,
    %cst_56 = arith.constant 0.000000e+00 : bf16
    %49 = vector.broadcast %cst_56 : bf16 to vector<8x128xbf16>
    %c0_57 = arith.constant 0 : index
    %c256 = arith.constant 256 : index
    %50 = vector.load %arg8[%c0_57, %c256] : memref<8x384xbf16, #tpu.memory_space<vmem>>, vector<8x128xbf16>
    tpu.vector_store %arg8[%c0_57, %c256], %49 {strides = array<i32>} : memref<8x384xbf16, #tpu.memory_space<vmem>>, vector<8x128xbf16>,
    %51 = arith.truncf %46 : vector<8x128xf32> to vector<8x128xbf16>
    %c0_58 = arith.constant 0 : index
    %c128_59 = arith.constant 128 : index
    %52 = vector.load %arg8[%c0_58, %c128_59] : memref<8x384xbf16, #tpu.memory_space<vmem>>, vector<8x128xbf16>
    tpu.vector_store %arg8[%c0_58, %c128_59], %51 {strides = array<i32>} : memref<8x384xbf16, #tpu.memory_space<vmem>>, vector<8x128xbf16>,
    %c0_60 = arith.constant 0 : index
    %c0_61 = arith.constant 0 : index
    %53 = vector.load %arg4[%c0_60, %c0_61] : memref<8x72xbf16, #tpu.memory_space<vmem>>, vector<8x72xbf16>
    %c0_62 = arith.constant 0 : index
    %c117_63 = arith.constant 117 : index
    %54 = vector.load %arg8[%c0_62, %c117_63] : memref<8x384xbf16, #tpu.memory_space<vmem>>, vector<8x128xbf16>
    %c0_64 = arith.constant 0 : index
    %c0_65 = arith.constant 0 : index
    %55 = vector.load %arg9[%c0_64, %c0_65] : memref<72x128xbf16, #tpu.memory_space<vmem>>, vector<8x128xbf16>
    tpu.vector_store %arg9[%c0_64, %c0_65], %54 {strides = array<i32>} : memref<72x128xbf16, #tpu.memory_space<vmem>>, vector<8x128xbf16>,
    %c0_66 = arith.constant 0 : index
    %c118_67 = arith.constant 118 : index
    %56 = vector.load %arg8[%c0_66, %c118_67] : memref<8x384xbf16, #tpu.memory_space<vmem>>, vector<8x128xbf16>
    %c8_68 = arith.constant 8 : index
    %c0_69 = arith.constant 0 : index
    %57 = vector.load %arg9[%c8_68, %c0_69] : memref<72x128xbf16, #tpu.memory_space<vmem>>, vector<8x128xbf16>
    tpu.vector_store %arg9[%c8_68, %c0_69], %56 {strides = array<i32>} : memref<72x128xbf16, #tpu.memory_space<vmem>>, vector<8x128xbf16>,
    %c0_70 = arith.constant 0 : index
    %c119_71 = arith.constant 119 : index
    %58 = vector.load %arg8[%c0_70, %c119_71] : memref<8x384xbf16, #tpu.memory_space<vmem>>, vector<8x128xbf16>
    %c16_72 = arith.constant 16 : index
    %c0_73 = arith.constant 0 : index
    %59 = vector.load %arg9[%c16_72, %c0_73] : memref<72x128xbf16, #tpu.memory_space<vmem>>, vector<8x128xbf16>
    tpu.vector_store %arg9[%c16_72, %c0_73], %58 {strides = array<i32>} : memref<72x128xbf16, #tpu.memory_space<vmem>>, vector<8x128xbf16>,
    %c0_74 = arith.constant 0 : index
    %c127_75 = arith.constant 127 : index
    %60 = vector.load %arg8[%c0_74, %c127_75] : memref<8x384xbf16, #tpu.memory_space<vmem>>, vector<8x128xbf16>
    %c24_76 = arith.constant 24 : index
    %c0_77 = arith.constant 0 : index
    %61 = vector.load %arg9[%c24_76, %c0_77] : memref<72x128xbf16, #tpu.memory_space<vmem>>, vector<8x128xbf16>
    tpu.vector_store %arg9[%c24_76, %c0_77], %60 {strides = array<i32>} : memref<72x128xbf16, #tpu.memory_space<vmem>>, vector<8x128xbf16>,
    %c0_78 = arith.constant 0 : index
    %c128_79 = arith.constant 128 : index
    %62 = vector.load %arg8[%c0_78, %c128_79] : memref<8x384xbf16, #tpu.memory_space<vmem>>, vector<8x128xbf16>
    %c32_80 = arith.constant 32 : index
    %c0_81 = arith.constant 0 : index
    %63 = vector.load %arg9[%c32_80, %c0_81] : memref<72x128xbf16, #tpu.memory_space<vmem>>, vector<8x128xbf16>
    tpu.vector_store %arg9[%c32_80, %c0_81], %62 {strides = array<i32>} : memref<72x128xbf16, #tpu.memory_space<vmem>>, vector<8x128xbf16>,
    %c0_82 = arith.constant 0 : index
    %c129_83 = arith.constant 129 : index
    %64 = vector.load %arg8[%c0_82, %c129_83] : memref<8x384xbf16, #tpu.memory_space<vmem>>, vector<8x128xbf16>
    %c40 = arith.constant 40 : index
    %c0_84 = arith.constant 0 : index
    %65 = vector.load %arg9[%c40, %c0_84] : memref<72x128xbf16, #tpu.memory_space<vmem>>, vector<8x128xbf16>
    tpu.vector_store %arg9[%c40, %c0_84], %64 {strides = array<i32>} : memref<72x128xbf16, #tpu.memory_space<vmem>>, vector<8x128xbf16>,
    %c0_85 = arith.constant 0 : index
    %c137_86 = arith.constant 137 : index
    %66 = vector.load %arg8[%c0_85, %c137_86] : memref<8x384xbf16, #tpu.memory_space<vmem>>, vector<8x128xbf16>
    %c48 = arith.constant 48 : index
    %c0_87 = arith.constant 0 : index
    %67 = vector.load %arg9[%c48, %c0_87] : memref<72x128xbf16, #tpu.memory_space<vmem>>, vector<8x128xbf16>
    tpu.vector_store %arg9[%c48, %c0_87], %66 {strides = array<i32>} : memref<72x128xbf16, #tpu.memory_space<vmem>>, vector<8x128xbf16>,
    %c0_88 = arith.constant 0 : index
    %c138_89 = arith.constant 138 : index
    %68 = vector.load %arg8[%c0_88, %c138_89] : memref<8x384xbf16, #tpu.memory_space<vmem>>, vector<8x128xbf16>
    %c56 = arith.constant 56 : index
    %c0_90 = arith.constant 0 : index
    %69 = vector.load %arg9[%c56, %c0_90] : memref<72x128xbf16, #tpu.memory_space<vmem>>, vector<8x128xbf16>
    tpu.vector_store %arg9[%c56, %c0_90], %68 {strides = array<i32>} : memref<72x128xbf16, #tpu.memory_space<vmem>>, vector<8x128xbf16>,
    %c0_91 = arith.constant 0 : index
    %c139_92 = arith.constant 139 : index
    %70 = vector.load %arg8[%c0_91, %c139_92] : memref<8x384xbf16, #tpu.memory_space<vmem>>, vector<8x128xbf16>
    %c64 = arith.constant 64 : index
    %c0_93 = arith.constant 0 : index
    %71 = vector.load %arg9[%c64, %c0_93] : memref<72x128xbf16, #tpu.memory_space<vmem>>, vector<8x128xbf16>
    tpu.vector_store %arg9[%c64, %c0_93], %70 {strides = array<i32>} : memref<72x128xbf16, #tpu.memory_space<vmem>>, vector<8x128xbf16>,
    %c0_94 = arith.constant 0 : index
    %c0_95 = arith.constant 0 : index
    %72 = vector.load %arg9[%c0_94, %c0_95] : memref<72x128xbf16, #tpu.memory_space<vmem>>, vector<72x128xbf16>
    %cst_96 = arith.constant dense<0.000000e+00> : vector<8x128xf32>
    %73 = tpu.matmul %53, %72, %cst_96 {dimension_numbers = #tpu.dot_dimension_numbers<[1], [0], [0], [1], [0, 0, 1, 1], [], []>} : vector<8x72xbf16>, vector<72x128xbf16>, vector<8x128xf32> -> vector<8x128xf32>
    %c0_97 = arith.constant 0 : index
    %c0_98 = arith.constant 0 : index
    %74 = vector.load %arg5[%c0_97, %c0_98] : memref<8x1xf32, #tpu.memory_space<vmem>>, vector<8x1xf32>
    %75 = vector.broadcast %74 : vector<8x1xf32> to vector<8x128xf32>
    %76 = arith.addf %73, %75 : vector<8x128xf32>
    %cst_99 = arith.constant 0.000000e+00 : f32
    %77 = vector.broadcast %cst_99 : f32 to vector<8x128xf32>
    %78 = arith.maximumf %76, %77 : vector<8x128xf32>
    %c0_100 = arith.constant 0 : index
    %c0_101 = arith.constant 0 : index
    %c0_102 = arith.constant 0 : index
    %79 = vector.load %arg7[%c0_100, %c0_101, %c0_102] : memref<1x8x128xf32, #tpu.memory_space<vmem>>, vector<1x8x128xf32>
    %80 = vector.shape_cast %79 : vector<1x8x128xf32> to vector<8x128xf32>
    %81 = vector.shape_cast %78 : vector<8x128xf32> to vector<1x8x128xf32>
    tpu.vector_store %arg7[%c0_100, %c0_101, %c0_102], %81 {strides = array<i32>} : memref<1x8x128xf32, #tpu.memory_space<vmem>>, vector<1x8x128xf32>,
    return
  }
  func.func @transform_0(%arg0: i32) -> (i32, i32, i32) {
    %c0_i32 = arith.constant 0 : i32
    %c0_i32_0 = arith.constant 0 : i32
    %c0_i32_1 = arith.constant 0 : i32
    return %arg0, %c0_i32, %c0_i32_0 : i32, i32, i32
  }
  func.func @transform_1(%arg0: i32) -> (i32, i32) {
    %c0_i32 = arith.constant 0 : i32
    %c0_i32_0 = arith.constant 0 : i32
    %c0_i32_1 = arith.constant 0 : i32
    return %c0_i32, %c0_i32_0 : i32, i32
  }
  func.func @transform_2(%arg0: i32) -> (i32, i32) {
    %c0_i32 = arith.constant 0 : i32
    %c0_i32_0 = arith.constant 0 : i32
    %c0_i32_1 = arith.constant 0 : i32
    return %c0_i32, %c0_i32_0 : i32, i32
  }
  func.func @transform_3(%arg0: i32) -> (i32, i32) {
    %c0_i32 = arith.constant 0 : i32
    %c0_i32_0 = arith.constant 0 : i32
    %c0_i32_1 = arith.constant 0 : i32
    return %c0_i32, %c0_i32_0 : i32, i32
  }
  func.func @transform_4(%arg0: i32) -> (i32, i32) {
    %c0_i32 = arith.constant 0 : i32
    %c0_i32_0 = arith.constant 0 : i32
    %c0_i32_1 = arith.constant 0 : i32
    return %c0_i32, %c0_i32_0 : i32, i32
  }
  func.func @transform_5(%arg0: i32) -> (i32, i32) {
    %c0_i32 = arith.constant 0 : i32
    %c0_i32_0 = arith.constant 0 : i32
    %c0_i32_1 = arith.constant 0 : i32
    return %c0_i32, %c0_i32_0 : i32, i32
  }
  func.func @transform_6(%arg0: i32) -> (i32, i32, i32) {
    %c0_i32 = arith.constant 0 : i32
    %c0_i32_0 = arith.constant 0 : i32
    %c0_i32_1 = arith.constant 0 : i32
    return %arg0, %c0_i32, %c0_i32_0 : i32, i32, i32
  }
}

</mosaic_0001>

<llo_original>
// kernel: down_block_forward.1
$region0: #{down_block_forward.1}
  #allocation0 [shape = 'u32[]', space=smem, size = 0x4, offset = 0x4, fixed_abs, tag = 'smem constant byte address 0x4 - core index']
  #allocation1 [shape = 'u32[144,128]{1,0:T(1,128)}', space=vmem, size = 0x12000, scoped, tag = 'internal scratch']
  #allocation2 [shape = 'bf16[8,384]{1,0:T(8,128)(2,1)}', space=vmem, size = 0x1800, scoped, tag = 'scratch operand']
  #allocation3 [shape = 'bf16[72,128]{1,0:T(8,128)(2,1)}', space=vmem, size = 0x4800, scoped, tag = 'scratch operand']
  %s0 = inlined_call_operand.vmem [shape: bf16[2,4,384], index: 0, kind: input, shape index: {}]
  %s1 = inlined_call_operand.vmem [shape: bf16[8,36], index: 1, kind: input, shape index: {}]
  %s2 = inlined_call_operand.vmem [shape: f32[8,1], index: 2, kind: input, shape index: {}]
  %s3 = inlined_call_operand.vmem [shape: bf16[8,72], index: 3, kind: input, shape index: {}]
  %s4 = inlined_call_operand.vmem [shape: f32[8,1], index: 4, kind: input, shape index: {}]
  %s5 = inlined_call_operand.vmem [shape: f32[1,128], index: 5, kind: input, shape index: {}]
  %s6 = inlined_call_operand.vmem [shape: f32[2,8,128], index: 6, kind: output, shape index: {}]
  %s7 = sld [smem:[#allocation0]]
  $region57: #{down_block_forward.1} parent=0
    _
  %s9 = ssub.s32 1, %s7
  %s10 = scalar_select 0, %s9, %s7
  loop: start=0, step=1, limit=4
  $region2: #{down_block_forward.1} parent=0 // loop_pre_header
    _
  $region3: #{down_block_forward.1} parent=0 // loop_header
    %s12 = sphi 0, %s16
    %p13 = scmp.ge.s32.totalorder %s12, 4
    %s22 = sphi 0, %s24
    %s25 = sphi 0, %s22
    %s26 = sphi 0, %s25
    %s42 = sphi 0, %s26
    %s46 = sphi 0, %s46
    %s48 = sphi 0, %s46
    %s49 = sphi 0, %s48
    %s63 = sphi 0, %s49
    %s67 = sphi 0, %s67
    %s69 = sphi 0, %s67
    %s70 = sphi 0, %s69
    %s84 = sphi 0, %s70
    %s88 = sphi 0, %s88
    %s90 = sphi 0, %s88
    %s91 = sphi 0, %s90
    %s105 = sphi 0, %s91
    %s109 = sphi 0, %s109
    %s111 = sphi 0, %s109
    %s112 = sphi 0, %s111
    %s126 = sphi 0, %s112
    %s130 = sphi 0, %s130
    %s132 = sphi 0, %s130
    %s133 = sphi 0, %s132
    %s147 = sphi 0, %s133
    %s153 = sphi 0, %s155
    %s156 = sphi 0, %s153
    %s157 = sphi 0, %s156
    %s173 = sphi 0, %s157
  $region4: #{down_block_forward.1} parent=0 // loop_header_branch
    %15 = sbr.rel (%p13) target = $region8
  $region5: #{down_block_forward.1} parent=0 // loop_body
    %s17 = ssub.s32 %s12, 1
    %s18 = ssub.s32 %s12, 2
    %s19 = sadd.s32 %s12, 1
    %s20 = ssub.s32 %s12, %s19
    %p21 = scmp.eq.s32.totalorder %s20, 0
    %s23 = sadd.s32 %s22, 1
    %s24 = scalar_select %p21, %s22, %s23
    %p27 = pneg %p21
    %p28 = scmp.eq.s32.totalorder %s12, 1
    %p29 = por %p27, %p28
    %p30 = scmp.ne.s32.totalorder %s22, %s25
    %p31 = scmp.eq.s32.totalorder %s12, 0
    %p32 = por %p30, %p31
    %p33 = scmp.ne.s32.totalorder %s22, %s25
    %p34 = scmp.eq.s32.totalorder %s17, 1
    %p35 = por %p33, %p34
    %p36 = scmp.ne.s32.totalorder %s25, %s26
    %p37 = scmp.eq.s32.totalorder %s17, 0
    %p38 = por %p36, %p37
    %p39 = scmp.ne.s32.totalorder %s25, %s26
    %p40 = scmp.eq.s32.totalorder %s18, 1
    %p41 = por %p39, %p40
    %p43 = scmp.ne.s32.totalorder %s26, %s42
    %p44 = scmp.eq.s32.totalorder %s18, 0
    %p45 = por %p43, %p44
    %s47 = sadd.s32 %s46, 1
    %p50 = scmp.eq.s32.totalorder %s12, 1
    %p51 = scmp.ne.s32.totalorder %s46, %s48
    %p52 = scmp.eq.s32.totalorder %s12, 0
    %p53 = por %p51, %p52
    %p54 = scmp.ne.s32.totalorder %s46, %s48
    %p55 = scmp.eq.s32.totalorder %s17, 1
    %p56 = por %p54, %p55
    %p57 = scmp.ne.s32.totalorder %s48, %s49
    %p58 = scmp.eq.s32.totalorder %s17, 0
    %p59 = por %p57, %p58
    %p60 = scmp.ne.s32.totalorder %s48, %s49
    %p61 = scmp.eq.s32.totalorder %s18, 1
    %p62 = por %p60, %p61
    %p64 = scmp.ne.s32.totalorder %s49, %s63
    %p65 = scmp.eq.s32.totalorder %s18, 0
    %p66 = por %p64, %p65
    %s68 = sadd.s32 %s67, 1
    %p71 = scmp.eq.s32.totalorder %s12, 1
    %p72 = scmp.ne.s32.totalorder %s67, %s69
    %p73 = scmp.eq.s32.totalorder %s12, 0
    %p74 = por %p72, %p73
    %p75 = scmp.ne.s32.totalorder %s67, %s69
    %p76 = scmp.eq.s32.totalorder %s17, 1
    %p77 = por %p75, %p76
    %p78 = scmp.ne.s32.totalorder %s69, %s70
    %p79 = scmp.eq.s32.totalorder %s17, 0
    %p80 = por %p78, %p79
    %p81 = scmp.ne.s32.totalorder %s69, %s70
    %p82 = scmp.eq.s32.totalorder %s18, 1
    %p83 = por %p81, %p82
    %p85 = scmp.ne.s32.totalorder %s70, %s84
    %p86 = scmp.eq.s32.totalorder %s18, 0
    %p87 = por %p85, %p86
    %s89 = sadd.s32 %s88, 1
    %p92 = scmp.eq.s32.totalorder %s12, 1
    %p93 = scmp.ne.s32.totalorder %s88, %s90
    %p94 = scmp.eq.s32.totalorder %s12, 0
    %p95 = por %p93, %p94
    %p96 = scmp.ne.s32.totalorder %s88, %s90
    %p97 = scmp.eq.s32.totalorder %s17, 1
    %p98 = por %p96, %p97
    %p99 = scmp.ne.s32.totalorder %s90, %s91
    %p100 = scmp.eq.s32.totalorder %s17, 0
    %p101 = por %p99, %p100
    %p102 = scmp.ne.s32.totalorder %s90, %s91
    %p103 = scmp.eq.s32.totalorder %s18, 1
    %p104 = por %p102, %p103
    %p106 = scmp.ne.s32.totalorder %s91, %s105
    %p107 = scmp.eq.s32.totalorder %s18, 0
    %p108 = por %p106, %p107
    %s110 = sadd.s32 %s109, 1
    %p113 = scmp.eq.s32.totalorder %s12, 1
    %p114 = scmp.ne.s32.totalorder %s109, %s111
    %p115 = scmp.eq.s32.totalorder %s12, 0
    %p116 = por %p114, %p115
    %p117 = scmp.ne.s32.totalorder %s109, %s111
    %p118 = scmp.eq.s32.totalorder %s17, 1
    %p119 = por %p117, %p118
    %p120 = scmp.ne.s32.totalorder %s111, %s112
    %p121 = scmp.eq.s32.totalorder %s17, 0
    %p122 = por %p120, %p121
    %p123 = scmp.ne.s32.totalorder %s111, %s112
    %p124 = scmp.eq.s32.totalorder %s18, 1
    %p125 = por %p123, %p124
    %p127 = scmp.ne.s32.totalorder %s112, %s126
    %p128 = scmp.eq.s32.totalorder %s18, 0
    %p129 = por %p127, %p128
    %s131 = sadd.s32 %s130, 1
    %p134 = scmp.eq.s32.totalorder %s12, 1
    %p135 = scmp.ne.s32.totalorder %s130, %s132
    %p136 = scmp.eq.s32.totalorder %s12, 0
    %p137 = por %p135, %p136
    %p138 = scmp.ne.s32.totalorder %s130, %s132
    %p139 = scmp.eq.s32.totalorder %s17, 1
    %p140 = por %p138, %p139
    %p141 = scmp.ne.s32.totalorder %s132, %s133
    %p142 = scmp.eq.s32.totalorder %s17, 0
    %p143 = por %p141, %p142
    %p144 = scmp.ne.s32.totalorder %s132, %s133
    %p145 = scmp.eq.s32.totalorder %s18, 1
    %p146 = por %p144, %p145
    %p148 = scmp.ne.s32.totalorder %s133, %s147
    %p149 = scmp.eq.s32.totalorder %s18, 0
    %p150 = por %p148, %p149
    %s151 = ssub.s32 %s12, %s19
    %p152 = scmp.eq.s32.totalorder %s151, 0
    %s154 = sadd.s32 %s153, 1
    %s155 = scalar_select %p152, %s153, %s154
    %p158 = pneg %p152
    %p159 = scmp.eq.s32.totalorder %s12, 1
    %p160 = por %p158, %p159
    %p161 = scmp.ne.s32.totalorder %s153, %s156
    %p162 = scmp.eq.s32.totalorder %s12, 0
    %p163 = por %p161, %p162
    %p164 = scmp.ne.s32.totalorder %s153, %s156
    %p165 = scmp.eq.s32.totalorder %s17, 1
    %p166 = por %p164, %p165
    %p167 = scmp.ne.s32.totalorder %s156, %s157
    %p168 = scmp.eq.s32.totalorder %s17, 0
    %p169 = por %p167, %p168
    %p170 = scmp.ne.s32.totalorder %s156, %s157
    %p171 = scmp.eq.s32.totalorder %s18, 1
    %p172 = por %p170, %p171
    %p174 = scmp.ne.s32.totalorder %s157, %s173
    %p175 = scmp.eq.s32.totalorder %s18, 0
    %p176 = por %p174, %p175
    %p177 = scmp.le.s32.totalorder 1, %s12
    %p178 = scmp.lt.s32.totalorder %s12, 3
    %p179 = pnand %p177, %p178
    %p180 = pneg %p179
    // Predicated region
    $region9: #{down_block_forward.1} parent=5 // pred_check
      _
    $region10: #{down_block_forward.1} parent=5 // pred_check_branch
      %182 = sbr.rel (%p179) target = $region12
    $region11: #{down_block_forward.1} parent=5 // pred_region
      %s183 = ssub.s32 %s12, 1
      // Predicated region
      $region13: #{down_block_forward.1} parent=11 // pred_check
        %p184 = pneg %p59
      $region14: #{down_block_forward.1} parent=11 // pred_check_branch
        %186 = sbr.rel (%p184) target = $region16
      $region15: #{down_block_forward.1} parent=11 // pred_region
        _
      $region16: #{down_block_forward.1} parent=11 // pred_fallthru
        _
      // Predicated region
      $region17: #{down_block_forward.1} parent=11 // pred_check
        %p187 = pneg %p80
      $region18: #{down_block_forward.1} parent=11 // pred_check_branch
        %189 = sbr.rel (%p187) target = $region20
      $region19: #{down_block_forward.1} parent=11 // pred_region
        _
      $region20: #{down_block_forward.1} parent=11 // pred_fallthru
        _
      // Predicated region
      $region21: #{down_block_forward.1} parent=11 // pred_check
        %p190 = pneg %p101
      $region22: #{down_block_forward.1} parent=11 // pred_check_branch
        %192 = sbr.rel (%p190) target = $region24
      $region23: #{down_block_forward.1} parent=11 // pred_region
        _
      $region24: #{down_block_forward.1} parent=11 // pred_fallthru
        _
      // Predicated region
      $region25: #{down_block_forward.1} parent=11 // pred_check
        %p193 = pneg %p122
      $region26: #{down_block_forward.1} parent=11 // pred_check_branch
        %195 = sbr.rel (%p193) target = $region28
      $region27: #{down_block_forward.1} parent=11 // pred_region
        _
      $region28: #{down_block_forward.1} parent=11 // pred_fallthru
        _
      // Predicated region
      $region29: #{down_block_forward.1} parent=11 // pred_check
        %p196 = pneg %p143
      $region30: #{down_block_forward.1} parent=11 // pred_check_branch
        %198 = sbr.rel (%p196) target = $region32
      $region31: #{down_block_forward.1} parent=11 // pred_region
        _
      $region32: #{down_block_forward.1} parent=11 // pred_fallthru
        _
    $region12: #{down_block_forward.1} parent=5 // pred_fallthru
      _
    %p199 = scmp.lt.s32.totalorder %s12, 2
    // Predicated region
    $region33: #{down_block_forward.1} parent=5 // pred_check
      %p200 = pneg %p199
    $region34: #{down_block_forward.1} parent=5 // pred_check_branch
      %202 = sbr.rel (%p200) target = $region36
    $region35: #{down_block_forward.1} parent=5 // pred_region
      // Predicated region
      $region37: #{down_block_forward.1} parent=35 // pred_check
        %p203 = pneg %p32
      $region38: #{down_block_forward.1} parent=35 // pred_check_branch
        %205 = sbr.rel (%p203) target = $region40
      $region39: #{down_block_forward.1} parent=35 // pred_region
        %p206 = scmp.lt.s32.totalorder %s12, 1
        %s207 = scalar_select %p206, %s12, 1
        %s208 = smul.addr %s207, 3
        %s209 = smul.addr %s208, 2
        %s210 = scalar_lea.vmem %s0, %s209
      $region40: #{down_block_forward.1} parent=35 // pred_fallthru
        _
    $region36: #{down_block_forward.1} parent=5 // pred_fallthru
      _
    %p211 = scmp.le.s32.totalorder 1, %s12
    %p212 = scmp.lt.s32.totalorder %s12, 3
    %p213 = pnand %p211, %p212
    %p214 = pneg %p213
    // Predicated region
    $region41: #{down_block_forward.1} parent=5 // pred_check
      _
    $region42: #{down_block_forward.1} parent=5 // pred_check_branch
      %216 = sbr.rel (%p213) target = $region44
    $region43: #{down_block_forward.1} parent=5 // pred_region
      %s217 = ssub.s32 %s12, 1
      %p218 = scmp.lt.s32.totalorder %s17, 1
      %s219 = scalar_select %p218, %s17, 1
      %s220 = smul.addr %s219, 3
      %s221 = smul.addr %s220, 2
      %s222 = scalar_lea.vmem %s0, %s221
      %p223 = pneg %p38
      %p224 = pneg %p35
      %p225 = pneg %p59
      %p226 = pneg %p56
      %p227 = pneg %p80
      %p228 = pneg %p77
      %p229 = pneg %p101
      %p230 = pneg %p98
      %p231 = pneg %p122
      %p232 = pneg %p119
      %p233 = pneg %p143
      %p234 = pneg %p140
      %p235 = pneg %p169
      %p236 = pneg %p166
      %p237 = scmp.lt.s32.totalorder %s17, 1
      %s238 = scalar_select %p237, %s17, 1
      %s239 = smul.addr %s238, 8
      %s240 = scalar_lea.vmem %s6, %s239
      %p241 = scmp.lt.s32.totalorder %s17, 1
      %s242 = scalar_select %p241, %s17, 1
      %s243 = smul.addr %s242, 3
      %s244 = smul.addr %s243, 2
      %s245 = scalar_lea.vmem %s0, %s244
      %p246 = scmp.lt.s32.totalorder %s17, 1
      %s247 = scalar_select %p246, %s17, 1
      %s248 = smul.addr %s247, 8
      %s249 = scalar_lea.vmem %s6, %s248
      %v251 = vld [vmem:[%s5] sm:$0x1]
      %v252 = vld [vmem:[%s1] sm:$0xf]
      %v253 = vld [vmem:[%s245] sm:$0xf]
      %v256 = vunpack.c.l.s4 1983009808
      %v257 = vunpack.c.0.s8 %v256
      %v258 = vlaneseq
      %v259 = vshrl.u32 %v258, 7
      %v260 = vsub.s32 %v257, %v259
      %v261 = vrot.slane %v253, %v260
      %262 = vrot.lane.b32.xlu0 %v261, 11
      %v263 = vpop.permute.xlu0 %262
      %v264 = vrot.slane %v263, 4
      %vm265 = vcmask 89088
      %v266 = vsel %vm265, %v263, %v264
      %268 = vst [vmem:[#allocation3] sm:$0x3] %v266
      %v269 = vld [vmem:[%s245] sm:$0xf]
      %v271 = vcombine.low %v269, %v269
      %v273 = vunpack.c.l.s4 1983009808
      %v274 = vunpack.c.0.s8 %v273
      %v275 = vlaneseq
      %v276 = vshrl.u32 %v275, 7
      %v277 = vsub.s32 %v274, %v276
      %v278 = vrot.slane %v271, %v277
      %279 = vrot.lane.b32.xlu0 %v278, 10
      %v280 = vpop.permute.xlu0 %279
      %v281 = vrot.slane %v280, 4
      %vm282 = vcmask 80896
      %v283 = vsel %vm282, %v280, %v281
      %285 = vst [vmem:[#allocation3] sm:$0xc] %v283
      %v286 = vld [vmem:[%s245] sm:$0xf]
      %v289 = vunpack.c.l.s4 1983009808
      %v290 = vunpack.c.0.s8 %v289
      %v291 = vlaneseq
      %v292 = vshrl.u32 %v291, 7
      %v293 = vsub.s32 %v290, %v292
      %v294 = vrot.slane %v286, %v293
      %295 = vrot.lane.b32.xlu0 %v294, 9
      %v296 = vpop.permute.xlu0 %295
      %v297 = vrot.slane %v296, 4
      %vm298 = vcmask 72704
      %v299 = vsel %vm298, %v296, %v297
      %301 = vst [vmem:[#allocation3 + $0x4] sm:$0x3] %v299
      %v302 = vld [vmem:[%s245] sm:$0xf]
      %v304 = vcombine.low %v302, %v302
      %v306 = vunpack.c.l.s4 1983009808
      %v307 = vunpack.c.0.s8 %v306
      %v308 = vlaneseq
      %v309 = vshrl.u32 %v308, 7
      %v310 = vsub.s32 %v307, %v309
      %v311 = vrot.slane %v304, %v310
      %312 = vrot.lane.b32.xlu0 %v311, 1
      %v313 = vpop.permute.xlu0 %312
      %v314 = vrot.slane %v313, 4
      %vm315 = vcmask 7168
      %v316 = vsel %vm315, %v313, %v314
      %318 = vst [vmem:[#allocation3 + $0x4] sm:$0xc] %v316
      %v319 = vld [vmem:[%s245 + $0x2] sm:$0x3]
      %320 = vst [vmem:[#allocation3 + $0x8] sm:$0x3] %v319
      %v321 = vld [vmem:[%s245 + $0x2] sm:$0xf]
      %v323 = vcombine.low %v321, %v321
      %v325 = vunpack.c.l.s4 1983009808
      %v326 = vunpack.c.0.s8 %v325
      %v327 = vlaneseq
      %v328 = vshrl.u32 %v327, 7
      %v329 = vsub.s32 %v326, %v328
      %v330 = vrot.slane %v323, %v329
      %331 = vrot.lane.b32.xlu0 %v330, 127
      %v332 = vpop.permute.xlu0 %331
      %v333 = vrot.slane %v332, 4
      %vm334 = vcmask 1039360
      %v335 = vsel %vm334, %v332, %v333
      %337 = vst [vmem:[#allocation3 + $0x8] sm:$0xc] %v335
      %v338 = vld [vmem:[%s245 + $0x2] sm:$0xf]
      %v341 = vunpack.c.l.s4 1983009808
      %v342 = vunpack.c.0.s8 %v341
      %v343 = vlaneseq
      %v344 = vshrl.u32 %v343, 7
      %v345 = vsub.s32 %v342, %v344
      %v346 = vrot.slane %v338, %v345
      %347 = vrot.lane.b32.xlu0 %v346, 119
      %v348 = vpop.permute.xlu0 %347
      %v349 = vrot.slane %v348, 4
      %vm350 = vcmask 973824
      %v351 = vsel %vm350, %v348, %v349
      %353 = vst [vmem:[#allocation3 + $0xc] sm:$0x3] %v351
      %v354 = vld [vmem:[%s245 + $0x2] sm:$0xf]
      %v356 = vcombine.low %v354, %v354
      %v358 = vunpack.c.l.s4 1983009808
      %v359 = vunpack.c.0.s8 %v358
      %v360 = vlaneseq
      %v361 = vshrl.u32 %v360, 7
      %v362 = vsub.s32 %v359, %v361
      %v363 = vrot.slane %v356, %v362
      %364 = vrot.lane.b32.xlu0 %v363, 118
      %v365 = vpop.permute.xlu0 %364
      %v366 = vrot.slane %v365, 4
      %vm367 = vcmask 965632
      %v368 = vsel %vm367, %v365, %v366
      %370 = vst [vmem:[#allocation3 + $0xc] sm:$0xc] %v368
      %v371 = vld [vmem:[%s245 + $0x2] sm:$0xf]
      %v374 = vunpack.c.l.s4 1983009808
      %v375 = vunpack.c.0.s8 %v374
      %v376 = vlaneseq
      %v377 = vshrl.u32 %v376, 7
      %v378 = vsub.s32 %v375, %v377
      %v379 = vrot.slane %v371, %v378
      %380 = vrot.lane.b32.xlu0 %v379, 117
      %v381 = vpop.permute.xlu0 %380
      %v382 = vrot.slane %v381, 4
      %vm383 = vcmask 957440
      %v384 = vsel %vm383, %v381, %v382
      %386 = vst [vmem:[#allocation3 + $0x10] sm:$0x3] %v384
      %v387 = vld [vmem:[#allocation3] sm:$0xf]
      %v388 = vld [vmem:[#allocation3 + $0x4] sm:$0xf]
      %v389 = vld [vmem:[#allocation3 + $0x8] sm:$0xf]
      %v390 = vld [vmem:[#allocation3 + $0xc] sm:$0xf]
      %v391 = vld [vmem:[#allocation3 + $0x10] sm:$0x3]
      %v392 = vld [vmem:[%s2] sm:$0xff]
      %394 = vset.pattern.permute.xlu0 0
      %395 = vperm.xlu0 %394, %v392
      %v396 = vpop.permute.xlu0 %395
      %v403 = vunpack.c.l.b16 %v387
      %v404 = vunpack.c.l.b16 %v388
      %v405 = vunpack.c.l.b16 %v389
      %v406 = vunpack.c.l.b16 %v390
      %v407 = vunpack.c.l.b16 %v391
      %v408 = vpack.c.b16 %v404, %v403
      %v409 = vpack.c.b16 %v406, %v405
      %v410 = vpack.c.b16 %v407, %v407
      %vm413 = vcmask 293888
      %v415 = vsel %vm413, %v252, 0
      %vm417 = vcmask 1041408
      %v419 = vsel %vm417, %v410, 0
      %421 = vmatprep.subr.bf16.mxu0 0
      %422 = vmatpush1.bf16.msra.mxu0 %v408
      %423 = vmatprep.subr.bf16.mxu0 0
      %424 = vmatpush1.bf16.msra.mxu0 %v409
      %425 = vmatprep.subr.bf16.mxu0 0
      %426 = vmatpush1.bf16.msra.mxu0 %v419
      %427 = vmatprep.subr.bf16.mxu0 0
      %428 = vmatpush1.bf16.msra.mxu0 0
      %429 = vmatprep.subr.bf16.mxu0 0
      %430 = vmatpush1.bf16.msra.mxu0 0
      %431 = vmatprep.subr.bf16.mxu0 0
      %432 = vmatpush1.bf16.msra.mxu0 0
      %433 = vmatprep.subr.bf16.mxu0 0
      %434 = vmatpush1.bf16.msra.mxu0 0
      %435 = vmatprep.subr.bf16.mxu0 0
      %436 = vmatpush1.bf16.msra.mxu0 0
      %437 = vmatprep.subr.bf16.mxu0 0
      %438 = vmatpush1.bf16.msra.mxu0 0
      %439 = vmatprep.subr.bf16.mxu0 0
      %440 = vmatpush1.bf16.msra.mxu0 0
      %441 = vmatprep.subr.bf16.mxu0 0
      %442 = vmatpush1.bf16.msra.mxu0 0
      %443 = vmatprep.subr.bf16.mxu0 0
      %444 = vmatpush1.bf16.msra.mxu0 0
      %445 = vmatprep.subr.bf16.mxu0 0
      %446 = vmatpush1.bf16.msra.mxu0 0
      %447 = vmatprep.subr.bf16.mxu0 0
      %448 = vmatpush1.bf16.msra.mxu0 0
      %449 = vmatprep.subr.bf16.mxu0 0
      %450 = vmatpush1.bf16.msra.mxu0 0
      %451 = vmatprep.subr.bf16.mxu0 0
      %452 = vmatpush1.bf16.msra.mxu0 0
      %453 = vmatprep.mubr.bf16.mxu0 0
      %454 = vmatmul.mubr.bf16.gmra.mrb[0].mxu0 %v415
      %v455 = vpop.f32.mrb[0].mxu0
      %v456 = vadd.f32 %v396, %v455
      %v457 = vpop.f32.mrb[0].mxu0
      %v458 = vpop.f32.mrb[0].mxu0
      %v459 = vpop.f32.mrb[0].mxu0
      %460 = vdwg.mxu0
      %v461 = vmax.f32 %v456, 0.0
      %v463 = vlaneseq
      %v464 = vshrl.u32 %v463, 7
      %v465 = vsub.s32 0, %v464
      %v466 = vrot.slane %v251, %v465
      %v468 = vmul.f32 %v461, %v466
      %469 = vst [vmem:[#allocation2] sm:$0xf] 0
      %470 = vst [vmem:[#allocation2 + $0x8] sm:$0xf] 0
      %v471 = vpack.c.bf16 %v468, %v468
      %472 = vst [vmem:[#allocation2 + $0x4] sm:$0xf] %v471
      %v473 = vld [vmem:[%s3] sm:$0xf]
      %v474 = vld [vmem:[#allocation2] sm:$0xff]
      %476 = vrot.lane.b32.xlu0 %v474, 11
      %v477 = vpop.permute.xlu0 %476
      %v478 = vrot.slane %v477, 4
      %v479 = vsel %vm265, %v477, %v478
      %481 = vst [vmem:[#allocation3] sm:$0xf] %v479
      %v482 = vld [vmem:[#allocation2] sm:$0xff]
      %484 = vrot.lane.b32.xlu0 %v482, 10
      %v485 = vpop.permute.xlu0 %484
      %v486 = vrot.slane %v485, 4
      %v487 = vsel %vm282, %v485, %v486
      %489 = vst [vmem:[#allocation3 + $0x4] sm:$0xf] %v487
      %v490 = vld [vmem:[#allocation2] sm:$0xff]
      %492 = vrot.lane.b32.xlu0 %v490, 9
      %v493 = vpop.permute.xlu0 %492
      %v494 = vrot.slane %v493, 4
      %v495 = vsel %vm298, %v493, %v494
      %497 = vst [vmem:[#allocation3 + $0x8] sm:$0xf] %v495
      %v498 = vld [vmem:[#allocation2] sm:$0xff]
      %500 = vrot.lane.b32.xlu0 %v498, 1
      %v501 = vpop.permute.xlu0 %500
      %v502 = vrot.slane %v501, 4
      %v503 = vsel %vm315, %v501, %v502
      %505 = vst [vmem:[#allocation3 + $0xc] sm:$0xf] %v503
      %v506 = vld [vmem:[#allocation2 + $0x4] sm:$0xf]
      %507 = vst [vmem:[#allocation3 + $0x10] sm:$0xf] %v506
      %v508 = vld [vmem:[#allocation2 + $0x4] sm:$0xff]
      %510 = vrot.lane.b32.xlu0 %v508, 127
      %v511 = vpop.permute.xlu0 %510
      %v512 = vrot.slane %v511, 4
      %v513 = vsel %vm334, %v511, %v512
      %515 = vst [vmem:[#allocation3 + $0x14] sm:$0xf] %v513
      %v516 = vld [vmem:[#allocation2 + $0x4] sm:$0xff]
      %518 = vrot.lane.b32.xlu0 %v516, 119
      %v519 = vpop.permute.xlu0 %518
      %v520 = vrot.slane %v519, 4
      %v521 = vsel %vm350, %v519, %v520
      %523 = vst [vmem:[#allocation3 + $0x18] sm:$0xf] %v521
      %v524 = vld [vmem:[#allocation2 + $0x4] sm:$0xff]
      %526 = vrot.lane.b32.xlu0 %v524, 118
      %v527 = vpop.permute.xlu0 %526
      %v528 = vrot.slane %v527, 4
      %v529 = vsel %vm367, %v527, %v528
      %531 = vst [vmem:[#allocation3 + $0x1c] sm:$0xf] %v529
      %v532 = vld [vmem:[#allocation2 + $0x4] sm:$0xff]
      %534 = vrot.lane.b32.xlu0 %v532, 117
      %v535 = vpop.permute.xlu0 %534
      %v536 = vrot.slane %v535, 4
      %v537 = vsel %vm383, %v535, %v536
      %539 = vst [vmem:[#allocation3 + $0x20] sm:$0xf] %v537
      %v540 = vld [vmem:[#allocation3] sm:$0xf]
      %v541 = vld [vmem:[#allocation3 + $0x4] sm:$0xf]
      %v542 = vld [vmem:[#allocation3 + $0x8] sm:$0xf]
      %v543 = vld [vmem:[#allocation3 + $0xc] sm:$0xf]
      %v544 = vld [vmem:[#allocation3 + $0x10] sm:$0xf]
      %v545 = vld [vmem:[#allocation3 + $0x14] sm:$0xf]
      %v546 = vld [vmem:[#allocation3 + $0x18] sm:$0xf]
      %v547 = vld [vmem:[#allocation3 + $0x1c] sm:$0xf]
      %v548 = vld [vmem:[#allocation3 + $0x20] sm:$0xf]
      %v549 = vld [vmem:[%s4] sm:$0xff]
      %551 = vset.pattern.permute.xlu0 0
      %552 = vperm.xlu0 %551, %v549
      %v553 = vpop.permute.xlu0 %552
      %v564 = vunpack.c.l.b16 %v540
      %v565 = vunpack.c.l.b16 %v541
      %v566 = vunpack.c.l.b16 %v542
      %v567 = vunpack.c.l.b16 %v543
      %v568 = vunpack.c.l.b16 %v544
      %v569 = vunpack.c.l.b16 %v545
      %v570 = vunpack.c.l.b16 %v546
      %v571 = vunpack.c.l.b16 %v547
      %v572 = vunpack.c.l.b16 %v548
      %v573 = vpack.c.b16 %v565, %v564
      %v574 = vpack.c.b16 %v567, %v566
      %v575 = vpack.c.b16 %v569, %v568
      %v576 = vpack.c.b16 %v571, %v570
      %v577 = vpack.c.b16 %v572, %v572
      %vm582 = vcmask 588800
      %v584 = vsel %vm582, %v473, 0
      %vm586 = vcmask 1043456
      %v588 = vsel %vm586, %v577, 0
      %590 = vmatprep.subr.bf16.mxu0 0
      %591 = vmatpush1.bf16.msra.mxu0 %v573
      %592 = vmatprep.subr.bf16.mxu0 0
      %593 = vmatpush1.bf16.msra.mxu0 %v574
      %594 = vmatprep.subr.bf16.mxu0 0
      %595 = vmatpush1.bf16.msra.mxu0 %v575
      %596 = vmatprep.subr.bf16.mxu0 0
      %597 = vmatpush1.bf16.msra.mxu0 %v576
      %598 = vmatprep.subr.bf16.mxu0 0
      %599 = vmatpush1.bf16.msra.mxu0 %v588
      %600 = vmatprep.subr.bf16.mxu0 0
      %601 = vmatpush1.bf16.msra.mxu0 0
      %602 = vmatprep.subr.bf16.mxu0 0
      %603 = vmatpush1.bf16.msra.mxu0 0
      %604 = vmatprep.subr.bf16.mxu0 0
      %605 = vmatpush1.bf16.msra.mxu0 0
      %606 = vmatprep.subr.bf16.mxu0 0
      %607 = vmatpush1.bf16.msra.mxu0 0
      %608 = vmatprep.subr.bf16.mxu0 0
      %609 = vmatpush1.bf16.msra.mxu0 0
      %610 = vmatprep.subr.bf16.mxu0 0
      %611 = vmatpush1.bf16.msra.mxu0 0
      %612 = vmatprep.subr.bf16.mxu0 0
      %613 = vmatpush1.bf16.msra.mxu0 0
      %614 = vmatprep.subr.bf16.mxu0 0
      %615 = vmatpush1.bf16.msra.mxu0 0
      %616 = vmatprep.subr.bf16.mxu0 0
      %617 = vmatpush1.bf16.msra.mxu0 0
      %618 = vmatprep.subr.bf16.mxu0 0
      %619 = vmatpush1.bf16.msra.mxu0 0
      %620 = vmatprep.subr.bf16.mxu0 0
      %621 = vmatpush1.bf16.msra.mxu0 0
      %622 = vmatprep.mubr.bf16.mxu0 0
      %623 = vmatmul.mubr.bf16.gmra.mrb[0].mxu0 %v584
      %v624 = vpop.f32.mrb[0].mxu0
      %v625 = vadd.f32 %v553, %v624
      %v626 = vpop.f32.mrb[0].mxu0
      %v627 = vpop.f32.mrb[0].mxu0
      %v628 = vpop.f32.mrb[0].mxu0
      %629 = vdwg.mxu0
      %v630 = vmax.f32 %v625, 0.0
      %631 = vst [vmem:[%s249] sm:$0xff] %v630
      %p632 = scmp.lt.s32.totalorder %s17, 1
      %s633 = scalar_select %p632, %s17, 1
      %s634 = smul.addr %s633, 8
      %s635 = scalar_lea.vmem %s6, %s634
      // Predicated region
      $region45: #{down_block_forward.1} parent=43 // pred_check
        %p636 = pneg %p166
      $region46: #{down_block_forward.1} parent=43 // pred_check_branch
        %638 = sbr.rel (%p636) target = $region48
      $region47: #{down_block_forward.1} parent=43 // pred_region
        _
      $region48: #{down_block_forward.1} parent=43 // pred_fallthru
        _
    $region44: #{down_block_forward.1} parent=5 // pred_fallthru
      _
    %p639 = scmp.le.s32.totalorder 2, %s12
    // Predicated region
    $region49: #{down_block_forward.1} parent=5 // pred_check
      %p640 = pneg %p639
    $region50: #{down_block_forward.1} parent=5 // pred_check_branch
      %642 = sbr.rel (%p640) target = $region52
    $region51: #{down_block_forward.1} parent=5 // pred_region
      %s643 = ssub.s32 %s12, 2
      // Predicated region
      $region53: #{down_block_forward.1} parent=51 // pred_check
        %p644 = pneg %p172
      $region54: #{down_block_forward.1} parent=51 // pred_check_branch
        %646 = sbr.rel (%p644) target = $region56
      $region55: #{down_block_forward.1} parent=51 // pred_region
        %p647 = scmp.lt.s32.totalorder %s18, 1
        %s648 = scalar_select %p647, %s18, 1
        %s649 = smul.addr %s648, 8
        %s650 = scalar_lea.vmem %s6, %s649
      $region56: #{down_block_forward.1} parent=51 // pred_fallthru
        _
    $region52: #{down_block_forward.1} parent=5 // pred_fallthru
      _
  $region6: #{down_block_forward.1} parent=0 // loop_footer
    %s16 = sadd.s32 1, %s12
  $region7: #{down_block_forward.1} parent=0 // loop_footer_branch
    %11 = sbr.rel target = $region3
  $region8: #{down_block_forward.1} parent=0 // loop_exit
    _

</llo_original>
